<compile_context>
chip_gen: v6e
topology: v6e:2x2x1
jax: 0.10.0
libtpu: 0.0.40
codegen_flags: <defaults>
</compile_context>

<pallas_src>
import jax
import jax.numpy as jnp
from jax import lax
from jax.experimental import pallas as pl
from jax.experimental.pallas import tpu as pltpu  # noqa: F401  (TPU backend assumed)


# ---------------------------------------------------------------------------
# Fused Pallas kernel
# ---------------------------------------------------------------------------
def fused_gnn_kernel(node_id_ref, src_ref, dst_row_ref, dst_col_ref,
                     emb_t_ref, w1l_ref, b1_ref, w1r_ref,
                     w2l_ref, b2_ref, w2r_ref, out_ref):
    """Embedding gather + adjacency build + 2x SAGEConv + edge dot, all in VMEM.

    Layout: features are (H, N) (nodes on lanes), edge features are (H, E).
      node_id_ref : (1, N)  int32
      src_ref     : (1, E)  int32   edge sources
      dst_row_ref : (1, E)  int32   edge destinations (row layout)
      dst_col_ref : (E, 1)  int32   edge destinations (column layout)
      emb_t_ref   : (H, NUM_EMB) f32  (embedding table, pre-transposed)
      w*_ref      : (H, H) f32, b*_ref : (H, 1) f32
      out_ref     : (1, E) f32  lane-dense per-edge scores
    """
    f32 = jnp.float32
    h, num_emb = emb_t_ref.shape
    n = node_id_ref.shape[1]
    e = src_ref.shape[1]

    # --- embedding lookup as one-hot matmul: X[d, i] = emb[node_id[i], d] ---------
    p_t = jnp.where(
        lax.broadcasted_iota(jnp.int32, (num_emb, n), 0) == node_id_ref[...], 1.0, 0.0)
    x = jnp.dot(emb_t_ref[...], p_t, preferred_element_type=f32)          # (H, N)

    # --- edge one-hot selectors ----------------------------------------------------
    s_src = jnp.where(
        lax.broadcasted_iota(jnp.int32, (n, e), 0) == src_ref[...], 1.0, 0.0)      # (N, E)
    s_dst_ne = jnp.where(
        lax.broadcasted_iota(jnp.int32, (n, e), 0) == dst_row_ref[...], 1.0, 0.0)  # (N, E)
    s_dst_en = jnp.where(
        lax.broadcasted_iota(jnp.int32, (e, n), 1) == dst_col_ref[...], 1.0, 0.0)  # (E, N)

    # --- transposed mean-aggregation adjacency: a_t[j, i] = A_norm[i, j] ------------
    a_t = jnp.dot(s_src, s_dst_en, preferred_element_type=f32)            # (N, N) counts j->i
    deg = jnp.sum(a_t, axis=0, keepdims=True)                             # (1, N) in-degree(i)
    a_t = a_t / jnp.maximum(deg, 1.0)                                     # isolated -> zero col

    # --- SAGEConv layer 1 (+relu) ----------------------------------------------------
    agg1 = jnp.dot(x, a_t, preferred_element_type=f32)                    # (H, N)
    h1 = (jnp.dot(w1l_ref[...], agg1, preferred_element_type=f32)
          + b1_ref[...]
          + jnp.dot(w1r_ref[...], x, preferred_element_type=f32))
    h1 = jnp.maximum(h1, 0.0)

    # --- SAGEConv layer 2 --------------------------------------------------------------
    agg2 = jnp.dot(h1, a_t, preferred_element_type=f32)
    h2 = (jnp.dot(w2l_ref[...], agg2, preferred_element_type=f32)
          + b2_ref[...]
          + jnp.dot(w2r_ref[...], h1, preferred_element_type=f32))

    # --- classifier: endpoint gather (MXU) + per-edge dot, lane-dense (1, E) output ----
    e1 = jnp.dot(h2, s_src, preferred_element_type=f32)                   # (H, E)
    e2 = jnp.dot(h2, s_dst_ne, preferred_element_type=f32)                # (H, E)
    out_ref[...] = jnp.sum(e1 * e2, axis=0, keepdims=True)                # (1, E)


# ---------------------------------------------------------------------------
# Wrapper: layout plumbing only (no compute) + single pallas_call
# ---------------------------------------------------------------------------
def model_forward(params, node_id, edge_index):
    emb = params["emb"]
    num_emb, h = emb.shape
    n = node_id.shape[0]
    e = edge_index.shape[1]

    # Static layout plumbing: transposed embedding table, column biases, index rows/cols.
    emb_t = emb.T                                                   # (H, NUM_EMB)
    node_id_row = node_id.reshape(1, n).astype(jnp.int32)
    src_row = edge_index[0].reshape(1, e).astype(jnp.int32)
    dst_row = edge_index[1].reshape(1, e).astype(jnp.int32)
    dst_col = edge_index[1].reshape(e, 1).astype(jnp.int32)
    b1 = params["conv1_bl"].reshape(h, 1)
    b2 = params["conv2_bl"].reshape(h, 1)

    operands = (node_id_row, src_row, dst_row, dst_col, emb_t,
                params["conv1_wl"], b1, params["conv1_wr"],
                params["conv2_wl"], b2, params["conv2_wr"])

    # Advisory cost estimate so XLA schedules the (latency-bound) custom call sensibly.
    flops = 2 * (h * num_emb * n            # embedding one-hot matmul
                 + n * e * n                # adjacency build
                 + 2 * (h * n * n + 2 * h * h * n)   # two SAGE layers
                 + 2 * h * n * e            # edge endpoint gathers
                 + h * e)                   # final reduce
    bytes_accessed = int(sum(a.size * a.dtype.itemsize for a in operands) + e * 4)

    def full(a):
        return pl.BlockSpec(a.shape, lambda: (0,) * a.ndim)

    pred_row = pl.pallas_call(
        fused_gnn_kernel,
        out_shape=jax.ShapeDtypeStruct((1, e), jnp.float32),
        in_specs=[full(a) for a in operands],
        out_specs=pl.BlockSpec((1, e), lambda: (0, 0)),
        cost_estimate=pl.CostEstimate(flops=flops, transcendentals=0,
                                      bytes_accessed=bytes_accessed),
    )(*operands)
    return pred_row[0]                                               # (E,)


# ---------------------------------------------------------------------------
# Pure-JAX reference (untransposed formulation) for correctness checking
# ---------------------------------------------------------------------------
def build_mean_adjacency(edge_index, num_nodes):
    src, dst = edge_index[0], edge_index[1]
    a = jnp.zeros((num_nodes, num_nodes), jnp.float32).at[dst, src].add(1.0)
    deg = a.sum(axis=1, keepdims=True)
    return a / jnp.maximum(deg, 1.0)


def model_forward_ref(params, node_id, edge_index):
    x = params["emb"][node_id]
    a = build_mean_adjacency(edge_index, params["emb"].shape[0])

    def sage(x, wl, bl, wr):
        return (a @ x) @ wl.T + bl + x @ wr.T

    h = jax.nn.relu(sage(x, params["conv1_wl"], params["conv1_bl"], params["conv1_wr"]))
    h = sage(h, params["conv2_wl"], params["conv2_bl"], params["conv2_wr"])
    return jnp.sum(h[edge_index[0]] * h[edge_index[1]], axis=-1)


if __name__ == "__main__":
    NUM_NODES = 16        # pytorch_graph_before.node_id.size(0)
    HIDDEN = 32           # hidden_channels
    NUM_EDGES = 24

    key = jax.random.PRNGKey(0)
    k_emb, k1l, k1b, k1r, k2l, k2b, k2r, k_src, k_dst = jax.random.split(key, 9)

    scale = 1.0 / jnp.sqrt(HIDDEN)
    params = {
        "emb": jax.random.normal(k_emb, (NUM_NODES, HIDDEN), jnp.float32),
        "conv1_wl": jax.random.uniform(k1l, (HIDDEN, HIDDEN), jnp.float32, -scale, scale),
        "conv1_bl": jax.random.uniform(k1b, (1, HIDDEN), jnp.float32, -scale, scale),
        "conv1_wr": jax.random.uniform(k1r, (HIDDEN, HIDDEN), jnp.float32, -scale, scale),
        "conv2_wl": jax.random.uniform(k2l, (HIDDEN, HIDDEN), jnp.float32, -scale, scale),
        "conv2_bl": jax.random.uniform(k2b, (1, HIDDEN), jnp.float32, -scale, scale),
        "conv2_wr": jax.random.uniform(k2r, (HIDDEN, HIDDEN), jnp.float32, -scale, scale),
    }

    node_id = jnp.arange(NUM_NODES, dtype=jnp.int32)
    edge_index = jnp.stack([
        jax.random.randint(k_src, (NUM_EDGES,), 0, NUM_NODES, dtype=jnp.int32),
        jax.random.randint(k_dst, (NUM_EDGES,), 0, NUM_NODES, dtype=jnp.int32),
    ], axis=0)                                                       # [2, E]

    pred = jax.jit(model_forward)(params, node_id, edge_index)
    pred = jax.block_until_ready(pred)

    ref = model_forward_ref(params, node_id, edge_index)
    assert pred.shape == (NUM_EDGES,)
    assert jnp.allclose(pred, ref, atol=1e-4, rtol=1e-4), "Pallas result mismatch vs JAX reference"

    print("KERNEL_OK")
</pallas_src>

<mosaic_0001>
module attributes {stable_mosaic.version = 11 : i64} {
  func.func @fused_gnn_kernel(%arg0: memref<1x16xi32, #tpu.memory_space<vmem>>, %arg1: memref<1x24xi32, #tpu.memory_space<vmem>>, %arg2: memref<1x24xi32, #tpu.memory_space<vmem>>, %arg3: memref<24x1xi32, #tpu.memory_space<vmem>>, %arg4: memref<32x16xf32, #tpu.memory_space<vmem>>, %arg5: memref<32x32xf32, #tpu.memory_space<vmem>>, %arg6: memref<32x1xf32, #tpu.memory_space<vmem>>, %arg7: memref<32x32xf32, #tpu.memory_space<vmem>>, %arg8: memref<32x32xf32, #tpu.memory_space<vmem>>, %arg9: memref<32x1xf32, #tpu.memory_space<vmem>>, %arg10: memref<32x32xf32, #tpu.memory_space<vmem>>, %arg11: memref<1x24xf32, #tpu.memory_space<vmem>>) attributes {dimension_semantics = [], scalar_prefetch = 0 : i64, scratch_operands = 0 : i64, tpu.core_type = #tpu.core_type<tc>} {
    %0 = tpu.iota {dimensions = array<i32: 0>} : vector<16x16xi32>
    %c0 = arith.constant 0 : index
    %c0_0 = arith.constant 0 : index
    %1 = vector.load %arg0[%c0, %c0_0] : memref<1x16xi32, #tpu.memory_space<vmem>>, vector<1x16xi32>
    %2 = vector.broadcast %1 : vector<1x16xi32> to vector<16x16xi32>
    %3 = arith.cmpi eq, %0, %2 : vector<16x16xi32>
    %cst = arith.constant 1.000000e+00 : f32
    %cst_1 = arith.constant 0.000000e+00 : f32
    %4 = vector.broadcast %cst : f32 to vector<16x16xf32>
    %5 = vector.broadcast %cst_1 : f32 to vector<16x16xf32>
    %6 = arith.select %3, %4, %5 : vector<16x16xi1>, vector<16x16xf32>
    %c0_2 = arith.constant 0 : index
    %c0_3 = arith.constant 0 : index
    %7 = vector.load %arg4[%c0_2, %c0_3] : memref<32x16xf32, #tpu.memory_space<vmem>>, vector<32x16xf32>
    %cst_4 = arith.constant dense<0.000000e+00> : vector<32x16xf32>
    %8 = tpu.matmul %7, %6, %cst_4 {dimension_numbers = #tpu.dot_dimension_numbers<[1], [0], [0], [1], [0, 0, 1, 1], [], []>} : vector<32x16xf32>, vector<16x16xf32>, vector<32x16xf32> -> vector<32x16xf32>
    %9 = tpu.iota {dimensions = array<i32: 0>} : vector<16x24xi32>
    %c0_5 = arith.constant 0 : index
    %c0_6 = arith.constant 0 : index
    %10 = vector.load %arg1[%c0_5, %c0_6] : memref<1x24xi32, #tpu.memory_space<vmem>>, vector<1x24xi32>
    %11 = vector.broadcast %10 : vector<1x24xi32> to vector<16x24xi32>
    %12 = arith.cmpi eq, %9, %11 : vector<16x24xi32>
    %cst_7 = arith.constant 1.000000e+00 : f32
    %cst_8 = arith.constant 0.000000e+00 : f32
    %13 = vector.broadcast %cst_7 : f32 to vector<16x24xf32>
    %14 = vector.broadcast %cst_8 : f32 to vector<16x24xf32>
    %15 = arith.select %12, %13, %14 : vector<16x24xi1>, vector<16x24xf32>
    %16 = tpu.iota {dimensions = array<i32: 0>} : vector<16x24xi32>
    %c0_9 = arith.constant 0 : index
    %c0_10 = arith.constant 0 : index
    %17 = vector.load %arg2[%c0_9, %c0_10] : memref<1x24xi32, #tpu.memory_space<vmem>>, vector<1x24xi32>
    %18 = vector.broadcast %17 : vector<1x24xi32> to vector<16x24xi32>
    %19 = arith.cmpi eq, %16, %18 : vector<16x24xi32>
    %cst_11 = arith.constant 1.000000e+00 : f32
    %cst_12 = arith.constant 0.000000e+00 : f32
    %20 = vector.broadcast %cst_11 : f32 to vector<16x24xf32>
    %21 = vector.broadcast %cst_12 : f32 to vector<16x24xf32>
    %22 = arith.select %19, %20, %21 : vector<16x24xi1>, vector<16x24xf32>
    %23 = tpu.iota {dimensions = array<i32: 1>} : vector<24x16xi32>
    %c0_13 = arith.constant 0 : index
    %c0_14 = arith.constant 0 : index
    %24 = vector.load %arg3[%c0_13, %c0_14] : memref<24x1xi32, #tpu.memory_space<vmem>>, vector<24x1xi32>
    %25 = vector.broadcast %24 : vector<24x1xi32> to vector<24x16xi32>
    %26 = arith.cmpi eq, %23, %25 : vector<24x16xi32>
    %cst_15 = arith.constant 1.000000e+00 : f32
    %cst_16 = arith.constant 0.000000e+00 : f32
    %27 = vector.broadcast %cst_15 : f32 to vector<24x16xf32>
    %28 = vector.broadcast %cst_16 : f32 to vector<24x16xf32>
    %29 = arith.select %26, %27, %28 : vector<24x16xi1>, vector<24x16xf32>
    %cst_17 = arith.constant dense<0.000000e+00> : vector<16x16xf32>
    %30 = tpu.matmul %15, %29, %cst_17 {dimension_numbers = #tpu.dot_dimension_numbers<[1], [0], [0], [1], [0, 0, 1, 1], [], []>} : vector<16x24xf32>, vector<24x16xf32>, vector<16x16xf32> -> vector<16x16xf32>
    %cst_18 = arith.constant dense<0.000000e+00> : vector<16xf32>
    %31 = vector.multi_reduction <add>, %30, %cst_18 [0] : vector<16x16xf32> to vector<16xf32>
    %32 = vector.shape_cast %31 : vector<16xf32> to vector<1x16xf32>
    %cst_19 = arith.constant 1.000000e+00 : f32
    %33 = vector.broadcast %cst_19 : f32 to vector<1x16xf32>
    %34 = arith.maximumf %32, %33 : vector<1x16xf32>
    %35 = vector.broadcast %34 : vector<1x16xf32> to vector<16x16xf32>
    %36 = arith.divf %30, %35 : vector<16x16xf32>
    %cst_20 = arith.constant dense<0.000000e+00> : vector<32x16xf32>
    %37 = tpu.matmul %8, %36, %cst_20 {dimension_numbers = #tpu.dot_dimension_numbers<[1], [0], [0], [1], [0, 0, 1, 1], [], []>} : vector<32x16xf32>, vector<16x16xf32>, vector<32x16xf32> -> vector<32x16xf32>
    %c0_21 = arith.constant 0 : index
    %c0_22 = arith.constant 0 : index
    %38 = vector.load %arg5[%c0_21, %c0_22] : memref<32x32xf32, #tpu.memory_space<vmem>>, vector<32x32xf32>
    %cst_23 = arith.constant dense<0.000000e+00> : vector<32x16xf32>
    %39 = tpu.matmul %38, %37, %cst_23 {dimension_numbers = #tpu.dot_dimension_numbers<[1], [0], [0], [1], [0, 0, 1, 1], [], []>} : vector<32x32xf32>, vector<32x16xf32>, vector<32x16xf32> -> vector<32x16xf32>
    %c0_24 = arith.constant 0 : index
    %c0_25 = arith.constant 0 : index
    %40 = vector.load %arg6[%c0_24, %c0_25] : memref<32x1xf32, #tpu.memory_space<vmem>>, vector<32x1xf32>
    %41 = vector.broadcast %40 : vector<32x1xf32> to vector<32x16xf32>
    %42 = arith.addf %39, %41 : vector<32x16xf32>
    %c0_26 = arith.constant 0 : index
    %c0_27 = arith.constant 0 : index
    %43 = vector.load %arg7[%c0_26, %c0_27] : memref<32x32xf32, #tpu.memory_space<vmem>>, vector<32x32xf32>
    %cst_28 = arith.constant dense<0.000000e+00> : vector<32x16xf32>
    %44 = tpu.matmul %43, %8, %cst_28 {dimension_numbers = #tpu.dot_dimension_numbers<[1], [0], [0], [1], [0, 0, 1, 1], [], []>} : vector<32x32xf32>, vector<32x16xf32>, vector<32x16xf32> -> vector<32x16xf32>
    %45 = arith.addf %42, %44 : vector<32x16xf32>
    %cst_29 = arith.constant 0.000000e+00 : f32
    %46 = vector.broadcast %cst_29 : f32 to vector<32x16xf32>
    %47 = arith.maximumf %45, %46 : vector<32x16xf32>
    %cst_30 = arith.constant dense<0.000000e+00> : vector<32x16xf32>
    %48 = tpu.matmul %47, %36, %cst_30 {dimension_numbers = #tpu.dot_dimension_numbers<[1], [0], [0], [1], [0, 0, 1, 1], [], []>} : vector<32x16xf32>, vector<16x16xf32>, vector<32x16xf32> -> vector<32x16xf32>
    %c0_31 = arith.constant 0 : index
    %c0_32 = arith.constant 0 : index
    %49 = vector.load %arg8[%c0_31, %c0_32] : memref<32x32xf32, #tpu.memory_space<vmem>>, vector<32x32xf32>
    %cst_33 = arith.constant dense<0.000000e+00> : vector<32x16xf32>
    %50 = tpu.matmul %49, %48, %cst_33 {dimension_numbers = #tpu.dot_dimension_numbers<[1], [0], [0], [1], [0, 0, 1, 1], [], []>} : vector<32x32xf32>, vector<32x16xf32>, vector<32x16xf32> -> vector<32x16xf32>
    %c0_34 = arith.constant 0 : index
    %c0_35 = arith.constant 0 : index
    %51 = vector.load %arg9[%c0_34, %c0_35] : memref<32x1xf32, #tpu.memory_space<vmem>>, vector<32x1xf32>
    %52 = vector.broadcast %51 : vector<32x1xf32> to vector<32x16xf32>
    %53 = arith.addf %50, %52 : vector<32x16xf32>
    %c0_36 = arith.constant 0 : index
    %c0_37 = arith.constant 0 : index
    %54 = vector.load %arg10[%c0_36, %c0_37] : memref<32x32xf32, #tpu.memory_space<vmem>>, vector<32x32xf32>
    %cst_38 = arith.constant dense<0.000000e+00> : vector<32x16xf32>
    %55 = tpu.matmul %54, %47, %cst_38 {dimension_numbers = #tpu.dot_dimension_numbers<[1], [0], [0], [1], [0, 0, 1, 1], [], []>} : vector<32x32xf32>, vector<32x16xf32>, vector<32x16xf32> -> vector<32x16xf32>
    %56 = arith.addf %53, %55 : vector<32x16xf32>
    %cst_39 = arith.constant dense<0.000000e+00> : vector<32x24xf32>
    %57 = tpu.matmul %56, %15, %cst_39 {dimension_numbers = #tpu.dot_dimension_numbers<[1], [0], [0], [1], [0, 0, 1, 1], [], []>} : vector<32x16xf32>, vector<16x24xf32>, vector<32x24xf32> -> vector<32x24xf32>
    %cst_40 = arith.constant dense<0.000000e+00> : vector<32x24xf32>
    %58 = tpu.matmul %56, %22, %cst_40 {dimension_numbers = #tpu.dot_dimension_numbers<[1], [0], [0], [1], [0, 0, 1, 1], [], []>} : vector<32x16xf32>, vector<16x24xf32>, vector<32x24xf32> -> vector<32x24xf32>
    %59 = arith.mulf %57, %58 : vector<32x24xf32>
    %cst_41 = arith.constant dense<0.000000e+00> : vector<24xf32>
    %60 = vector.multi_reduction <add>, %59, %cst_41 [0] : vector<32x24xf32> to vector<24xf32>
    %61 = vector.shape_cast %60 : vector<24xf32> to vector<1x24xf32>
    %c0_42 = arith.constant 0 : index
    %c0_43 = arith.constant 0 : index
    %62 = vector.load %arg11[%c0_42, %c0_43] : memref<1x24xf32, #tpu.memory_space<vmem>>, vector<1x24xf32>
    tpu.vector_store %arg11[%c0_42, %c0_43], %61 {strides = array<i32>} : memref<1x24xf32, #tpu.memory_space<vmem>>, vector<1x24xf32>,
    return
  }
}

</mosaic_0001>

<llo_original>
// kernel: model_forward.1
$region0: #{model_forward.1}
  #allocation0 [shape = 'u32[]', space=smem, size = 0x4, offset = 0x4, fixed_abs, tag = 'smem constant byte address 0x4 - core index']
  #allocation1 [shape = 'u32[144,128]{1,0:T(1,128)}', space=vmem, size = 0x12000, scoped, tag = 'internal scratch']
  %s0 = inlined_call_operand.vmem [shape: s32[1,16], index: 0, kind: input, shape index: {}]
  %s1 = inlined_call_operand.vmem [shape: s32[1,24], index: 1, kind: input, shape index: {}]
  %s2 = inlined_call_operand.vmem [shape: s32[1,24], index: 2, kind: input, shape index: {}]
  %s3 = inlined_call_operand.vmem [shape: s32[24,1], index: 3, kind: input, shape index: {}]
  %s4 = inlined_call_operand.vmem [shape: f32[32,16], index: 4, kind: input, shape index: {}]
  %s5 = inlined_call_operand.vmem [shape: f32[32,32], index: 5, kind: input, shape index: {}]
  %s6 = inlined_call_operand.vmem [shape: f32[32,1], index: 6, kind: input, shape index: {}]
  %s7 = inlined_call_operand.vmem [shape: f32[32,32], index: 7, kind: input, shape index: {}]
  %s8 = inlined_call_operand.vmem [shape: f32[32,32], index: 8, kind: input, shape index: {}]
  %s9 = inlined_call_operand.vmem [shape: f32[32,1], index: 9, kind: input, shape index: {}]
  %s10 = inlined_call_operand.vmem [shape: f32[32,32], index: 10, kind: input, shape index: {}]
  %s11 = inlined_call_operand.hbm [shape: f32[1,24], index: 11, kind: output, shape index: {}]
  %s12 = sld [smem:[#allocation0]]
  $region54: #{model_forward.1} parent=0
    _
  %s14 = ssub.s32 1, %s12
  %s15 = scalar_select 0, %s14, %s12
  $region1: #{model_forward.1} parent=0
    #allocation2 [shape = 'u8[512]{0}', space=vmem, size = 0x400, scoped, tag = 'output window, operand 0, single buffered']
    #allocation3 [shape = 's32[1]{0}', space=sflag, size = 0x4, scoped, tag = 'scoped memory for model_forward.1']
    %16 = vsyncpa [#allocation3], 0
    // Predicated region
    $region2: #{model_forward.1} parent=1 // pred_check
      _
    $region3: #{model_forward.1} parent=1 // pred_check_branch
      %18 = sbr.rel (0) target = $region5
    $region4: #{model_forward.1} parent=1 // pred_region
      _
    $region5: #{model_forward.1} parent=1 // pred_fallthru
      _
    // Predicated region
    $region6: #{model_forward.1} parent=1 // pred_check
      _
    $region7: #{model_forward.1} parent=1 // pred_check_branch
      %20 = sbr.rel (0) target = $region9
    $region8: #{model_forward.1} parent=1 // pred_region
      _
    $region9: #{model_forward.1} parent=1 // pred_fallthru
      _
    // Predicated region
    $region10: #{model_forward.1} parent=1 // pred_check
      _
    $region11: #{model_forward.1} parent=1 // pred_check_branch
      %22 = sbr.rel (0) target = $region13
    $region12: #{model_forward.1} parent=1 // pred_region
      _
    $region13: #{model_forward.1} parent=1 // pred_fallthru
      _
    // Predicated region
    $region14: #{model_forward.1} parent=1 // pred_check
      _
    $region15: #{model_forward.1} parent=1 // pred_check_branch
      %24 = sbr.rel (0) target = $region17
    $region16: #{model_forward.1} parent=1 // pred_region
      _
    $region17: #{model_forward.1} parent=1 // pred_fallthru
      _
    // Predicated region
    $region18: #{model_forward.1} parent=1 // pred_check
      _
    $region19: #{model_forward.1} parent=1 // pred_check_branch
      %26 = sbr.rel (0) target = $region21
    $region20: #{model_forward.1} parent=1 // pred_region
      _
    $region21: #{model_forward.1} parent=1 // pred_fallthru
      _
    // Predicated region
    $region22: #{model_forward.1} parent=1 // pred_check
      _
    $region23: #{model_forward.1} parent=1 // pred_check_branch
      %28 = sbr.rel (0) target = $region25
    $region24: #{model_forward.1} parent=1 // pred_region
      _
    $region25: #{model_forward.1} parent=1 // pred_fallthru
      _
    // Predicated region
    $region26: #{model_forward.1} parent=1 // pred_check
      _
    $region27: #{model_forward.1} parent=1 // pred_check_branch
      %30 = sbr.rel (0) target = $region29
    $region28: #{model_forward.1} parent=1 // pred_region
      _
    $region29: #{model_forward.1} parent=1 // pred_fallthru
      _
    // Predicated region
    $region30: #{model_forward.1} parent=1 // pred_check
      _
    $region31: #{model_forward.1} parent=1 // pred_check_branch
      %32 = sbr.rel (0) target = $region33
    $region32: #{model_forward.1} parent=1 // pred_region
      _
    $region33: #{model_forward.1} parent=1 // pred_fallthru
      _
    // Predicated region
    $region34: #{model_forward.1} parent=1 // pred_check
      _
    $region35: #{model_forward.1} parent=1 // pred_check_branch
      %34 = sbr.rel (0) target = $region37
    $region36: #{model_forward.1} parent=1 // pred_region
      _
    $region37: #{model_forward.1} parent=1 // pred_fallthru
      _
    // Predicated region
    $region38: #{model_forward.1} parent=1 // pred_check
      _
    $region39: #{model_forward.1} parent=1 // pred_check_branch
      %36 = sbr.rel (0) target = $region41
    $region40: #{model_forward.1} parent=1 // pred_region
      _
    $region41: #{model_forward.1} parent=1 // pred_fallthru
      _
    // Predicated region
    $region42: #{model_forward.1} parent=1 // pred_check
      _
    $region43: #{model_forward.1} parent=1 // pred_check_branch
      %38 = sbr.rel (0) target = $region45
    $region44: #{model_forward.1} parent=1 // pred_region
      _
    $region45: #{model_forward.1} parent=1 // pred_fallthru
      _
    %v39 = vlaneseq
    %v40 = vshrl.u32 %v39, 7
    %v41 = vadd.s32 %v40, 8
    %v42 = vld [vmem:[%s0] sm:$0x1]
    %v43 = vlaneseq
    %v44 = vshrl.u32 %v43, 7
    %v45 = vsub.s32 0, %v44
    %v46 = vrot.slane %v42, %v45
    %vm47 = vcmp.eq.s32.totalorder %v40, %v46
    %vm48 = vcmp.eq.s32.totalorder %v41, %v46
    %v49 = vsel %vm47, 1.0, 0.0
    %v50 = vsel %vm48, 1.0, 0.0
    %v51 = vld [vmem:[%s4] sm:$0xff]
    %v52 = vld [vmem:[%s4 + $0x8] sm:$0xff]
    %v53 = vld [vmem:[%s4 + $0x10] sm:$0xff]
    %v54 = vld [vmem:[%s4 + $0x18] sm:$0xff]
    %vm55 = vcmask 130048
    %v57 = vsel %vm55, %v51, 0
    %v60 = vsel %vm55, %v52, 0
    %v63 = vsel %vm55, %v53, 0
    %v66 = vsel %vm55, %v54, 0
    %68 = vmatprep.subr.mxu0 0.0
    %69 = vmatpush1.msra.mxu0 0.0
    %70 = vmatprep.subr.mxu0 0.0
    %71 = vmatpush1.msra.mxu0 0.0
    %72 = vmatprep.subr.mxu0 0.0
    %73 = vmatpush1.msra.mxu0 0.0
    %74 = vmatprep.subr.mxu0 0.0
    %75 = vmatpush1.msra.mxu0 0.0
    %76 = vmatprep.subr.mxu0 0.0
    %77 = vmatpush1.msra.mxu0 0.0
    %78 = vmatprep.subr.mxu0 0.0
    %79 = vmatpush1.msra.mxu0 0.0
    %80 = vmatprep.subr.mxu0 0.0
    %81 = vmatpush1.msra.mxu0 0.0
    %82 = vmatprep.subr.mxu0 0.0
    %83 = vmatpush1.msra.mxu0 0.0
    %84 = vmatprep.subr.mxu0 0.0
    %85 = vmatpush1.msra.mxu0 0.0
    %86 = vmatprep.subr.mxu0 0.0
    %87 = vmatpush1.msra.mxu0 0.0
    %88 = vmatprep.subr.mxu0 0.0
    %89 = vmatpush1.msra.mxu0 0.0
    %90 = vmatprep.subr.mxu0 0.0
    %91 = vmatpush1.msra.mxu0 0.0
    %92 = vmatprep.subr.mxu0 0.0
    %93 = vmatpush1.msra.mxu0 0.0
    %94 = vmatprep.subr.mxu0 0.0
    %95 = vmatpush1.msra.mxu0 0.0
    %96 = vmatprep.subr.mxu0 0.0
    %97 = vmatpush1.msra.mxu0 %v50
    %98 = vmatprep.subr.mxu0 0.0
    %99 = vmatpush1.msra.mxu0 %v49
    %100 = vmatprep.subr.mxu0 0.0
    %101 = vmatpush2.msra.mxu0 0.0
    %102 = vmatprep.subr.mxu0 0.0
    %103 = vmatpush2.msra.mxu0 0.0
    %104 = vmatprep.subr.mxu0 0.0
    %105 = vmatpush2.msra.mxu0 0.0
    %106 = vmatprep.subr.mxu0 0.0
    %107 = vmatpush2.msra.mxu0 0.0
    %108 = vmatprep.subr.mxu0 0.0
    %109 = vmatpush2.msra.mxu0 0.0
    %110 = vmatprep.subr.mxu0 0.0
    %111 = vmatpush2.msra.mxu0 0.0
    %112 = vmatprep.subr.mxu0 0.0
    %113 = vmatpush2.msra.mxu0 0.0
    %114 = vmatprep.subr.mxu0 0.0
    %115 = vmatpush2.msra.mxu0 0.0
    %116 = vmatprep.subr.mxu0 0.0
    %117 = vmatpush2.msra.mxu0 0.0
    %118 = vmatprep.subr.mxu0 0.0
    %119 = vmatpush2.msra.mxu0 0.0
    %120 = vmatprep.subr.mxu0 0.0
    %121 = vmatpush2.msra.mxu0 0.0
    %122 = vmatprep.subr.mxu0 0.0
    %123 = vmatpush2.msra.mxu0 0.0
    %124 = vmatprep.subr.mxu0 0.0
    %125 = vmatpush2.msra.mxu0 0.0
    %126 = vmatprep.subr.mxu0 0.0
    %127 = vmatpush2.msra.mxu0 0.0
    %128 = vmatprep.subr.mxu0 0.0
    %129 = vmatpush2.msra.mxu0 0.0
    %130 = vmatprep.subr.mxu0 0.0
    %131 = vmatpush2.msra.mxu0 0.0
    %132 = vmatprep.mubr.f32.mxu0 0.0
    %133 = vmatmul.mubr.f32.gmra.mxu0 %v57
    %v134 = vpop.f32.mrf.mxu0
    %v135 = vadd.f32 0.0, %v134
    %v136 = vpop.f32.mrf.mxu0
    %137 = vmatprep.mubr.f32.mxu0 0.0
    %138 = vmatmul.mubr.f32.gmra.mxu0 %v60
    %v139 = vpop.f32.mrf.mxu0
    %v140 = vadd.f32 0.0, %v139
    %v141 = vpop.f32.mrf.mxu0
    %142 = vmatprep.mubr.f32.mxu0 0.0
    %143 = vmatmul.mubr.f32.gmra.mxu0 %v63
    %v144 = vpop.f32.mrf.mxu0
    %v145 = vadd.f32 0.0, %v144
    %v146 = vpop.f32.mrf.mxu0
    %147 = vmatprep.mubr.f32.mxu0 0.0
    %148 = vmatmul.mubr.f32.gmra.mxu0 %v66
    %v149 = vpop.f32.mrf.mxu0
    %v150 = vadd.f32 0.0, %v149
    %v151 = vpop.f32.mrf.mxu0
    %152 = vdwg.mxu0
    %v153 = vld [vmem:[%s1] sm:$0x1]
    %v154 = vlaneseq
    %v155 = vshrl.u32 %v154, 7
    %v156 = vsub.s32 0, %v155
    %v157 = vrot.slane %v153, %v156
    %vm158 = vcmp.eq.s32.totalorder %v40, %v157
    %vm159 = vcmp.eq.s32.totalorder %v41, %v157
    %v160 = vsel %vm158, 1.0, 0.0
    %v161 = vsel %vm159, 1.0, 0.0
    %v162 = vld [vmem:[%s2] sm:$0x1]
    %v163 = vlaneseq
    %v164 = vshrl.u32 %v163, 7
    %v165 = vsub.s32 0, %v164
    %v166 = vrot.slane %v162, %v165
    %vm167 = vcmp.eq.s32.totalorder %v40, %v166
    %vm168 = vcmp.eq.s32.totalorder %v41, %v166
    %v169 = vsel %vm167, 1.0, 0.0
    %v170 = vsel %vm168, 1.0, 0.0
    %v171 = vlaneseq
    %v172 = vand.u32 %v171, 127
    %v173 = vld [vmem:[%s3] sm:$0xff]
    %v174 = vld [vmem:[%s3 + $0x8] sm:$0xff]
    %v175 = vld [vmem:[%s3 + $0x10] sm:$0xff]
    %176 = vset.pattern.permute.xlu0 0
    %177 = vperm.xlu0 %176, %v173
    %v178 = vpop.permute.xlu0 %177
    %179 = vset.pattern.permute.xlu0 0
    %180 = vperm.xlu0 %179, %v174
    %v181 = vpop.permute.xlu0 %180
    %182 = vset.pattern.permute.xlu0 0
    %183 = vperm.xlu0 %182, %v175
    %v184 = vpop.permute.xlu0 %183
    %vm185 = vcmp.eq.s32.totalorder %v172, %v178
    %vm186 = vcmp.eq.s32.totalorder %v172, %v181
    %vm187 = vcmp.eq.s32.totalorder %v172, %v184
    %v188 = vsel %vm185, 1.0, 0.0
    %v189 = vsel %vm186, 1.0, 0.0
    %v190 = vsel %vm187, 1.0, 0.0
    %vm191 = vcmask 195584
    %v193 = vsel %vm191, %v160, 0
    %v196 = vsel %vm191, %v161, 0
    %198 = vmatprep.subr.mxu0 0.0
    %199 = vmatpush1.msra.mxu0 0.0
    %200 = vmatprep.subr.mxu0 0.0
    %201 = vmatpush1.msra.mxu0 0.0
    %202 = vmatprep.subr.mxu0 0.0
    %203 = vmatpush1.msra.mxu0 0.0
    %204 = vmatprep.subr.mxu0 0.0
    %205 = vmatpush1.msra.mxu0 0.0
    %206 = vmatprep.subr.mxu0 0.0
    %207 = vmatpush1.msra.mxu0 0.0
    %208 = vmatprep.subr.mxu0 0.0
    %209 = vmatpush1.msra.mxu0 0.0
    %210 = vmatprep.subr.mxu0 0.0
    %211 = vmatpush1.msra.mxu0 0.0
    %212 = vmatprep.subr.mxu0 0.0
    %213 = vmatpush1.msra.mxu0 0.0
    %214 = vmatprep.subr.mxu0 0.0
    %215 = vmatpush1.msra.mxu0 0.0
    %216 = vmatprep.subr.mxu0 0.0
    %217 = vmatpush1.msra.mxu0 0.0
    %218 = vmatprep.subr.mxu0 0.0
    %219 = vmatpush1.msra.mxu0 0.0
    %220 = vmatprep.subr.mxu0 0.0
    %221 = vmatpush1.msra.mxu0 0.0
    %222 = vmatprep.subr.mxu0 0.0
    %223 = vmatpush1.msra.mxu0 0.0
    %224 = vmatprep.subr.mxu0 0.0
    %225 = vmatpush1.msra.mxu0 %v190
    %226 = vmatprep.subr.mxu0 0.0
    %227 = vmatpush1.msra.mxu0 %v189
    %228 = vmatprep.subr.mxu0 0.0
    %229 = vmatpush1.msra.mxu0 %v188
    %230 = vmatprep.subr.mxu0 0.0
    %231 = vmatpush2.msra.mxu0 0.0
    %232 = vmatprep.subr.mxu0 0.0
    %233 = vmatpush2.msra.mxu0 0.0
    %234 = vmatprep.subr.mxu0 0.0
    %235 = vmatpush2.msra.mxu0 0.0
    %236 = vmatprep.subr.mxu0 0.0
    %237 = vmatpush2.msra.mxu0 0.0
    %238 = vmatprep.subr.mxu0 0.0
    %239 = vmatpush2.msra.mxu0 0.0
    %240 = vmatprep.subr.mxu0 0.0
    %241 = vmatpush2.msra.mxu0 0.0
    %242 = vmatprep.subr.mxu0 0.0
    %243 = vmatpush2.msra.mxu0 0.0
    %244 = vmatprep.subr.mxu0 0.0
    %245 = vmatpush2.msra.mxu0 0.0
    %246 = vmatprep.subr.mxu0 0.0
    %247 = vmatpush2.msra.mxu0 0.0
    %248 = vmatprep.subr.mxu0 0.0
    %249 = vmatpush2.msra.mxu0 0.0
    %250 = vmatprep.subr.mxu0 0.0
    %251 = vmatpush2.msra.mxu0 0.0
    %252 = vmatprep.subr.mxu0 0.0
    %253 = vmatpush2.msra.mxu0 0.0
    %254 = vmatprep.subr.mxu0 0.0
    %255 = vmatpush2.msra.mxu0 0.0
    %256 = vmatprep.subr.mxu0 0.0
    %257 = vmatpush2.msra.mxu0 0.0
    %258 = vmatprep.subr.mxu0 0.0
    %259 = vmatpush2.msra.mxu0 0.0
    %260 = vmatprep.subr.mxu0 0.0
    %261 = vmatpush2.msra.mxu0 0.0
    %262 = vmatprep.mubr.f32.mxu0 0.0
    %263 = vmatmul.mubr.f32.gmra.mxu0 %v193
    %v264 = vpop.f32.mrf.mxu0
    %v265 = vadd.f32 0.0, %v264
    %v266 = vpop.f32.mrf.mxu0
    %267 = vmatprep.mubr.f32.mxu0 0.0
    %268 = vmatmul.mubr.f32.gmra.mxu0 %v196
    %v269 = vpop.f32.mrf.mxu0
    %v270 = vadd.f32 0.0, %v269
    %v271 = vpop.f32.mrf.mxu0
    %272 = vdwg.mxu0
    %v273 = vsel %vm55, %v265, 0.0
    %v274 = vsel %vm55, %v270, 0.0
    %v275 = vadd.f32 %v273, %v274
    %v276 = vrot.slane %v275, 4
    %v277 = vadd.f32 %v275, %v276
    %v278 = vrot.slane %v277, 2
    %v279 = vadd.f32 %v277, %v278
    %v280 = vrot.slane %v279, 1
    %v281 = vadd.f32 %v279, %v280
    %v282 = vmax.f32 %v281, 1.0
    %v283 = vrcp.pop %v282
    %v284 = vmul.f32 %v265, %v283
    %v285 = vmul.f32 %v270, %v283
    %v287 = vsel %vm55, %v135, 0
    %v290 = vsel %vm55, %v140, 0
    %v293 = vsel %vm55, %v145, 0
    %v296 = vsel %vm55, %v150, 0
    %298 = vmatprep.subr.mxu0 0.0
    %299 = vmatpush1.msra.mxu0 0.0
    %300 = vmatprep.subr.mxu0 0.0
    %301 = vmatpush1.msra.mxu0 0.0
    %302 = vmatprep.subr.mxu0 0.0
    %303 = vmatpush1.msra.mxu0 0.0
    %304 = vmatprep.subr.mxu0 0.0
    %305 = vmatpush1.msra.mxu0 0.0
    %306 = vmatprep.subr.mxu0 0.0
    %307 = vmatpush1.msra.mxu0 0.0
    %308 = vmatprep.subr.mxu0 0.0
    %309 = vmatpush1.msra.mxu0 0.0
    %310 = vmatprep.subr.mxu0 0.0
    %311 = vmatpush1.msra.mxu0 0.0
    %312 = vmatprep.subr.mxu0 0.0
    %313 = vmatpush1.msra.mxu0 0.0
    %314 = vmatprep.subr.mxu0 0.0
    %315 = vmatpush1.msra.mxu0 0.0
    %316 = vmatprep.subr.mxu0 0.0
    %317 = vmatpush1.msra.mxu0 0.0
    %318 = vmatprep.subr.mxu0 0.0
    %319 = vmatpush1.msra.mxu0 0.0
    %320 = vmatprep.subr.mxu0 0.0
    %321 = vmatpush1.msra.mxu0 0.0
    %322 = vmatprep.subr.mxu0 0.0
    %323 = vmatpush1.msra.mxu0 0.0
    %324 = vmatprep.subr.mxu0 0.0
    %325 = vmatpush1.msra.mxu0 0.0
    %326 = vmatprep.subr.mxu0 0.0
    %327 = vmatpush1.msra.mxu0 %v285
    %328 = vmatprep.subr.mxu0 0.0
    %329 = vmatpush1.msra.mxu0 %v284
    %330 = vmatprep.subr.mxu0 0.0
    %331 = vmatpush2.msra.mxu0 0.0
    %332 = vmatprep.subr.mxu0 0.0
    %333 = vmatpush2.msra.mxu0 0.0
    %334 = vmatprep.subr.mxu0 0.0
    %335 = vmatpush2.msra.mxu0 0.0
    %336 = vmatprep.subr.mxu0 0.0
    %337 = vmatpush2.msra.mxu0 0.0
    %338 = vmatprep.subr.mxu0 0.0
    %339 = vmatpush2.msra.mxu0 0.0
    %340 = vmatprep.subr.mxu0 0.0
    %341 = vmatpush2.msra.mxu0 0.0
    %342 = vmatprep.subr.mxu0 0.0
    %343 = vmatpush2.msra.mxu0 0.0
    %344 = vmatprep.subr.mxu0 0.0
    %345 = vmatpush2.msra.mxu0 0.0
    %346 = vmatprep.subr.mxu0 0.0
    %347 = vmatpush2.msra.mxu0 0.0
    %348 = vmatprep.subr.mxu0 0.0
    %349 = vmatpush2.msra.mxu0 0.0
    %350 = vmatprep.subr.mxu0 0.0
    %351 = vmatpush2.msra.mxu0 0.0
    %352 = vmatprep.subr.mxu0 0.0
    %353 = vmatpush2.msra.mxu0 0.0
    %354 = vmatprep.subr.mxu0 0.0
    %355 = vmatpush2.msra.mxu0 0.0
    %356 = vmatprep.subr.mxu0 0.0
    %357 = vmatpush2.msra.mxu0 0.0
    %358 = vmatprep.subr.mxu0 0.0
    %359 = vmatpush2.msra.mxu0 0.0
    %360 = vmatprep.subr.mxu0 0.0
    %361 = vmatpush2.msra.mxu0 0.0
    %362 = vmatprep.mubr.f32.mxu0 0.0
    %363 = vmatmul.mubr.f32.gmra.mxu0 %v287
    %v364 = vpop.f32.mrf.mxu0
    %v365 = vadd.f32 0.0, %v364
    %v366 = vpop.f32.mrf.mxu0
    %367 = vmatprep.mubr.f32.mxu0 0.0
    %368 = vmatmul.mubr.f32.gmra.mxu0 %v290
    %v369 = vpop.f32.mrf.mxu0
    %v370 = vadd.f32 0.0, %v369
    %v371 = vpop.f32.mrf.mxu0
    %372 = vmatprep.mubr.f32.mxu0 0.0
    %373 = vmatmul.mubr.f32.gmra.mxu0 %v293
    %v374 = vpop.f32.mrf.mxu0
    %v375 = vadd.f32 0.0, %v374
    %v376 = vpop.f32.mrf.mxu0
    %377 = vmatprep.mubr.f32.mxu0 0.0
    %378 = vmatmul.mubr.f32.gmra.mxu0 %v296
    %v379 = vpop.f32.mrf.mxu0
    %v380 = vadd.f32 0.0, %v379
    %v381 = vpop.f32.mrf.mxu0
    %382 = vdwg.mxu0
    %v383 = vld [vmem:[%s5] sm:$0xff]
    %v384 = vld [vmem:[%s5 + $0x8] sm:$0xff]
    %v385 = vld [vmem:[%s5 + $0x10] sm:$0xff]
    %v386 = vld [vmem:[%s5 + $0x18] sm:$0xff]
    %v387 = vld [vmem:[%s6] sm:$0xff]
    %v388 = vld [vmem:[%s6 + $0x8] sm:$0xff]
    %v389 = vld [vmem:[%s6 + $0x10] sm:$0xff]
    %v390 = vld [vmem:[%s6 + $0x18] sm:$0xff]
    %392 = vset.pattern.permute.xlu0 0
    %393 = vperm.xlu0 %392, %v387
    %v394 = vpop.permute.xlu0 %393
    %397 = vset.pattern.permute.xlu0 0
    %398 = vperm.xlu0 %397, %v388
    %v399 = vpop.permute.xlu0 %398
    %402 = vset.pattern.permute.xlu0 0
    %403 = vperm.xlu0 %402, %v389
    %v404 = vpop.permute.xlu0 %403
    %407 = vset.pattern.permute.xlu0 0
    %408 = vperm.xlu0 %407, %v390
    %v409 = vpop.permute.xlu0 %408
    %vm411 = vcmask 261120
    %v413 = vsel %vm411, %v383, 0
    %v416 = vsel %vm411, %v384, 0
    %v419 = vsel %vm411, %v385, 0
    %v422 = vsel %vm411, %v386, 0
    %424 = vmatprep.subr.mxu0 0.0
    %425 = vmatpush1.msra.mxu0 0.0
    %426 = vmatprep.subr.mxu0 0.0
    %427 = vmatpush1.msra.mxu0 0.0
    %428 = vmatprep.subr.mxu0 0.0
    %429 = vmatpush1.msra.mxu0 0.0
    %430 = vmatprep.subr.mxu0 0.0
    %431 = vmatpush1.msra.mxu0 0.0
    %432 = vmatprep.subr.mxu0 0.0
    %433 = vmatpush1.msra.mxu0 0.0
    %434 = vmatprep.subr.mxu0 0.0
    %435 = vmatpush1.msra.mxu0 0.0
    %436 = vmatprep.subr.mxu0 0.0
    %437 = vmatpush1.msra.mxu0 0.0
    %438 = vmatprep.subr.mxu0 0.0
    %439 = vmatpush1.msra.mxu0 0.0
    %440 = vmatprep.subr.mxu0 0.0
    %441 = vmatpush1.msra.mxu0 0.0
    %442 = vmatprep.subr.mxu0 0.0
    %443 = vmatpush1.msra.mxu0 0.0
    %444 = vmatprep.subr.mxu0 0.0
    %445 = vmatpush1.msra.mxu0 0.0
    %446 = vmatprep.subr.mxu0 0.0
    %447 = vmatpush1.msra.mxu0 0.0
    %448 = vmatprep.subr.mxu0 0.0
    %449 = vmatpush1.msra.mxu0 %v380
    %450 = vmatprep.subr.mxu0 0.0
    %451 = vmatpush1.msra.mxu0 %v375
    %452 = vmatprep.subr.mxu0 0.0
    %453 = vmatpush1.msra.mxu0 %v370
    %454 = vmatprep.subr.mxu0 0.0
    %455 = vmatpush1.msra.mxu0 %v365
    %456 = vmatprep.subr.mxu0 0.0
    %457 = vmatpush2.msra.mxu0 0.0
    %458 = vmatprep.subr.mxu0 0.0
    %459 = vmatpush2.msra.mxu0 0.0
    %460 = vmatprep.subr.mxu0 0.0
    %461 = vmatpush2.msra.mxu0 0.0
    %462 = vmatprep.subr.mxu0 0.0
    %463 = vmatpush2.msra.mxu0 0.0
    %464 = vmatprep.subr.mxu0 0.0
    %465 = vmatpush2.msra.mxu0 0.0
    %466 = vmatprep.subr.mxu0 0.0
    %467 = vmatpush2.msra.mxu0 0.0
    %468 = vmatprep.subr.mxu0 0.0
    %469 = vmatpush2.msra.mxu0 0.0
    %470 = vmatprep.subr.mxu0 0.0
    %471 = vmatpush2.msra.mxu0 0.0
    %472 = vmatprep.subr.mxu0 0.0
    %473 = vmatpush2.msra.mxu0 0.0
    %474 = vmatprep.subr.mxu0 0.0
    %475 = vmatpush2.msra.mxu0 0.0
    %476 = vmatprep.subr.mxu0 0.0
    %477 = vmatpush2.msra.mxu0 0.0
    %478 = vmatprep.subr.mxu0 0.0
    %479 = vmatpush2.msra.mxu0 0.0
    %480 = vmatprep.subr.mxu0 0.0
    %481 = vmatpush2.msra.mxu0 0.0
    %482 = vmatprep.subr.mxu0 0.0
    %483 = vmatpush2.msra.mxu0 0.0
    %484 = vmatprep.subr.mxu0 0.0
    %485 = vmatpush2.msra.mxu0 0.0
    %486 = vmatprep.subr.mxu0 0.0
    %487 = vmatpush2.msra.mxu0 0.0
    %488 = vmatprep.mubr.f32.mxu0 0.0
    %489 = vmatmul.mubr.f32.gmra.mxu0 %v413
    %v490 = vpop.f32.mrf.mxu0
    %v491 = vadd.f32 %v394, %v490
    %v492 = vpop.f32.mrf.mxu0
    %493 = vmatprep.mubr.f32.mxu0 0.0
    %494 = vmatmul.mubr.f32.gmra.mxu0 %v416
    %v495 = vpop.f32.mrf.mxu0
    %v496 = vadd.f32 %v399, %v495
    %v497 = vpop.f32.mrf.mxu0
    %498 = vmatprep.mubr.f32.mxu0 0.0
    %499 = vmatmul.mubr.f32.gmra.mxu0 %v419
    %v500 = vpop.f32.mrf.mxu0
    %v501 = vadd.f32 %v404, %v500
    %v502 = vpop.f32.mrf.mxu0
    %503 = vmatprep.mubr.f32.mxu0 0.0
    %504 = vmatmul.mubr.f32.gmra.mxu0 %v422
    %v505 = vpop.f32.mrf.mxu0
    %v506 = vadd.f32 %v409, %v505
    %v507 = vpop.f32.mrf.mxu0
    %508 = vdwg.mxu0
    %v509 = vld [vmem:[%s7] sm:$0xff]
    %v510 = vld [vmem:[%s7 + $0x8] sm:$0xff]
    %v511 = vld [vmem:[%s7 + $0x10] sm:$0xff]
    %v512 = vld [vmem:[%s7 + $0x18] sm:$0xff]
    %v514 = vsel %vm411, %v509, 0
    %v517 = vsel %vm411, %v510, 0
    %v520 = vsel %vm411, %v511, 0
    %v523 = vsel %vm411, %v512, 0
    %525 = vmatprep.subr.mxu0 0.0
    %526 = vmatpush1.msra.mxu0 0.0
    %527 = vmatprep.subr.mxu0 0.0
    %528 = vmatpush1.msra.mxu0 0.0
    %529 = vmatprep.subr.mxu0 0.0
    %530 = vmatpush1.msra.mxu0 0.0
    %531 = vmatprep.subr.mxu0 0.0
    %532 = vmatpush1.msra.mxu0 0.0
    %533 = vmatprep.subr.mxu0 0.0
    %534 = vmatpush1.msra.mxu0 0.0
    %535 = vmatprep.subr.mxu0 0.0
    %536 = vmatpush1.msra.mxu0 0.0
    %537 = vmatprep.subr.mxu0 0.0
    %538 = vmatpush1.msra.mxu0 0.0
    %539 = vmatprep.subr.mxu0 0.0
    %540 = vmatpush1.msra.mxu0 0.0
    %541 = vmatprep.subr.mxu0 0.0
    %542 = vmatpush1.msra.mxu0 0.0
    %543 = vmatprep.subr.mxu0 0.0
    %544 = vmatpush1.msra.mxu0 0.0
    %545 = vmatprep.subr.mxu0 0.0
    %546 = vmatpush1.msra.mxu0 0.0
    %547 = vmatprep.subr.mxu0 0.0
    %548 = vmatpush1.msra.mxu0 0.0
    %549 = vmatprep.subr.mxu0 0.0
    %550 = vmatpush1.msra.mxu0 %v150
    %551 = vmatprep.subr.mxu0 0.0
    %552 = vmatpush1.msra.mxu0 %v145
    %553 = vmatprep.subr.mxu0 0.0
    %554 = vmatpush1.msra.mxu0 %v140
    %555 = vmatprep.subr.mxu0 0.0
    %556 = vmatpush1.msra.mxu0 %v135
    %557 = vmatprep.subr.mxu0 0.0
    %558 = vmatpush2.msra.mxu0 0.0
    %559 = vmatprep.subr.mxu0 0.0
    %560 = vmatpush2.msra.mxu0 0.0
    %561 = vmatprep.subr.mxu0 0.0
    %562 = vmatpush2.msra.mxu0 0.0
    %563 = vmatprep.subr.mxu0 0.0
    %564 = vmatpush2.msra.mxu0 0.0
    %565 = vmatprep.subr.mxu0 0.0
    %566 = vmatpush2.msra.mxu0 0.0
    %567 = vmatprep.subr.mxu0 0.0
    %568 = vmatpush2.msra.mxu0 0.0
    %569 = vmatprep.subr.mxu0 0.0
    %570 = vmatpush2.msra.mxu0 0.0
    %571 = vmatprep.subr.mxu0 0.0
    %572 = vmatpush2.msra.mxu0 0.0
    %573 = vmatprep.subr.mxu0 0.0
    %574 = vmatpush2.msra.mxu0 0.0
    %575 = vmatprep.subr.mxu0 0.0
    %576 = vmatpush2.msra.mxu0 0.0
    %577 = vmatprep.subr.mxu0 0.0
    %578 = vmatpush2.msra.mxu0 0.0
    %579 = vmatprep.subr.mxu0 0.0
    %580 = vmatpush2.msra.mxu0 0.0
    %581 = vmatprep.subr.mxu0 0.0
    %582 = vmatpush2.msra.mxu0 0.0
    %583 = vmatprep.subr.mxu0 0.0
    %584 = vmatpush2.msra.mxu0 0.0
    %585 = vmatprep.subr.mxu0 0.0
    %586 = vmatpush2.msra.mxu0 0.0
    %587 = vmatprep.subr.mxu0 0.0
    %588 = vmatpush2.msra.mxu0 0.0
    %589 = vmatprep.mubr.f32.mxu0 0.0
    %590 = vmatmul.mubr.f32.gmra.mxu0 %v514
    %v591 = vpop.f32.mrf.mxu0
    %v592 = vadd.f32 0.0, %v591
    %v593 = vpop.f32.mrf.mxu0
    %594 = vmatprep.mubr.f32.mxu0 0.0
    %595 = vmatmul.mubr.f32.gmra.mxu0 %v517
    %v596 = vpop.f32.mrf.mxu0
    %v597 = vadd.f32 0.0, %v596
    %v598 = vpop.f32.mrf.mxu0
    %599 = vmatprep.mubr.f32.mxu0 0.0
    %600 = vmatmul.mubr.f32.gmra.mxu0 %v520
    %v601 = vpop.f32.mrf.mxu0
    %v602 = vadd.f32 0.0, %v601
    %v603 = vpop.f32.mrf.mxu0
    %604 = vmatprep.mubr.f32.mxu0 0.0
    %605 = vmatmul.mubr.f32.gmra.mxu0 %v523
    %v606 = vpop.f32.mrf.mxu0
    %v607 = vadd.f32 0.0, %v606
    %v608 = vpop.f32.mrf.mxu0
    %609 = vdwg.mxu0
    %v610 = vadd.f32 %v491, %v592
    %v611 = vadd.f32 %v496, %v597
    %v612 = vadd.f32 %v501, %v602
    %v613 = vadd.f32 %v506, %v607
    %v614 = vmax.f32 %v610, 0.0
    %v615 = vmax.f32 %v611, 0.0
    %v616 = vmax.f32 %v612, 0.0
    %v617 = vmax.f32 %v613, 0.0
    %v619 = vsel %vm55, %v614, 0
    %v622 = vsel %vm55, %v615, 0
    %v625 = vsel %vm55, %v616, 0
    %v628 = vsel %vm55, %v617, 0
    %630 = vmatprep.subr.mxu0 0.0
    %631 = vmatpush1.msra.mxu0 0.0
    %632 = vmatprep.subr.mxu0 0.0
    %633 = vmatpush1.msra.mxu0 0.0
    %634 = vmatprep.subr.mxu0 0.0
    %635 = vmatpush1.msra.mxu0 0.0
    %636 = vmatprep.subr.mxu0 0.0
    %637 = vmatpush1.msra.mxu0 0.0
    %638 = vmatprep.subr.mxu0 0.0
    %639 = vmatpush1.msra.mxu0 0.0
    %640 = vmatprep.subr.mxu0 0.0
    %641 = vmatpush1.msra.mxu0 0.0
    %642 = vmatprep.subr.mxu0 0.0
    %643 = vmatpush1.msra.mxu0 0.0
    %644 = vmatprep.subr.mxu0 0.0
    %645 = vmatpush1.msra.mxu0 0.0
    %646 = vmatprep.subr.mxu0 0.0
    %647 = vmatpush1.msra.mxu0 0.0
    %648 = vmatprep.subr.mxu0 0.0
    %649 = vmatpush1.msra.mxu0 0.0
    %650 = vmatprep.subr.mxu0 0.0
    %651 = vmatpush1.msra.mxu0 0.0
    %652 = vmatprep.subr.mxu0 0.0
    %653 = vmatpush1.msra.mxu0 0.0
    %654 = vmatprep.subr.mxu0 0.0
    %655 = vmatpush1.msra.mxu0 0.0
    %656 = vmatprep.subr.mxu0 0.0
    %657 = vmatpush1.msra.mxu0 0.0
    %658 = vmatprep.subr.mxu0 0.0
    %659 = vmatpush1.msra.mxu0 %v285
    %660 = vmatprep.subr.mxu0 0.0
    %661 = vmatpush1.msra.mxu0 %v284
    %662 = vmatprep.subr.mxu0 0.0
    %663 = vmatpush2.msra.mxu0 0.0
    %664 = vmatprep.subr.mxu0 0.0
    %665 = vmatpush2.msra.mxu0 0.0
    %666 = vmatprep.subr.mxu0 0.0
    %667 = vmatpush2.msra.mxu0 0.0
    %668 = vmatprep.subr.mxu0 0.0
    %669 = vmatpush2.msra.mxu0 0.0
    %670 = vmatprep.subr.mxu0 0.0
    %671 = vmatpush2.msra.mxu0 0.0
    %672 = vmatprep.subr.mxu0 0.0
    %673 = vmatpush2.msra.mxu0 0.0
    %674 = vmatprep.subr.mxu0 0.0
    %675 = vmatpush2.msra.mxu0 0.0
    %676 = vmatprep.subr.mxu0 0.0
    %677 = vmatpush2.msra.mxu0 0.0
    %678 = vmatprep.subr.mxu0 0.0
    %679 = vmatpush2.msra.mxu0 0.0
    %680 = vmatprep.subr.mxu0 0.0
    %681 = vmatpush2.msra.mxu0 0.0
    %682 = vmatprep.subr.mxu0 0.0
    %683 = vmatpush2.msra.mxu0 0.0
    %684 = vmatprep.subr.mxu0 0.0
    %685 = vmatpush2.msra.mxu0 0.0
    %686 = vmatprep.subr.mxu0 0.0
    %687 = vmatpush2.msra.mxu0 0.0
    %688 = vmatprep.subr.mxu0 0.0
    %689 = vmatpush2.msra.mxu0 0.0
    %690 = vmatprep.subr.mxu0 0.0
    %691 = vmatpush2.msra.mxu0 0.0
    %692 = vmatprep.subr.mxu0 0.0
    %693 = vmatpush2.msra.mxu0 0.0
    %694 = vmatprep.mubr.f32.mxu0 0.0
    %695 = vmatmul.mubr.f32.gmra.mxu0 %v619
    %v696 = vpop.f32.mrf.mxu0
    %v697 = vadd.f32 0.0, %v696
    %v698 = vpop.f32.mrf.mxu0
    %699 = vmatprep.mubr.f32.mxu0 0.0
    %700 = vmatmul.mubr.f32.gmra.mxu0 %v622
    %v701 = vpop.f32.mrf.mxu0
    %v702 = vadd.f32 0.0, %v701
    %v703 = vpop.f32.mrf.mxu0
    %704 = vmatprep.mubr.f32.mxu0 0.0
    %705 = vmatmul.mubr.f32.gmra.mxu0 %v625
    %v706 = vpop.f32.mrf.mxu0
    %v707 = vadd.f32 0.0, %v706
    %v708 = vpop.f32.mrf.mxu0
    %709 = vmatprep.mubr.f32.mxu0 0.0
    %710 = vmatmul.mubr.f32.gmra.mxu0 %v628
    %v711 = vpop.f32.mrf.mxu0
    %v712 = vadd.f32 0.0, %v711
    %v713 = vpop.f32.mrf.mxu0
    %714 = vdwg.mxu0
    %v715 = vld [vmem:[%s8] sm:$0xff]
    %v716 = vld [vmem:[%s8 + $0x8] sm:$0xff]
    %v717 = vld [vmem:[%s8 + $0x10] sm:$0xff]
    %v718 = vld [vmem:[%s8 + $0x18] sm:$0xff]
    %v719 = vld [vmem:[%s9] sm:$0xff]
    %v720 = vld [vmem:[%s9 + $0x8] sm:$0xff]
    %v721 = vld [vmem:[%s9 + $0x10] sm:$0xff]
    %v722 = vld [vmem:[%s9 + $0x18] sm:$0xff]
    %724 = vset.pattern.permute.xlu0 0
    %725 = vperm.xlu0 %724, %v719
    %v726 = vpop.permute.xlu0 %725
    %729 = vset.pattern.permute.xlu0 0
    %730 = vperm.xlu0 %729, %v720
    %v731 = vpop.permute.xlu0 %730
    %734 = vset.pattern.permute.xlu0 0
    %735 = vperm.xlu0 %734, %v721
    %v736 = vpop.permute.xlu0 %735
    %739 = vset.pattern.permute.xlu0 0
    %740 = vperm.xlu0 %739, %v722
    %v741 = vpop.permute.xlu0 %740
    %v744 = vsel %vm411, %v715, 0
    %v747 = vsel %vm411, %v716, 0
    %v750 = vsel %vm411, %v717, 0
    %v753 = vsel %vm411, %v718, 0
    %755 = vmatprep.subr.mxu0 0.0
    %756 = vmatpush1.msra.mxu0 0.0
    %757 = vmatprep.subr.mxu0 0.0
    %758 = vmatpush1.msra.mxu0 0.0
    %759 = vmatprep.subr.mxu0 0.0
    %760 = vmatpush1.msra.mxu0 0.0
    %761 = vmatprep.subr.mxu0 0.0
    %762 = vmatpush1.msra.mxu0 0.0
    %763 = vmatprep.subr.mxu0 0.0
    %764 = vmatpush1.msra.mxu0 0.0
    %765 = vmatprep.subr.mxu0 0.0
    %766 = vmatpush1.msra.mxu0 0.0
    %767 = vmatprep.subr.mxu0 0.0
    %768 = vmatpush1.msra.mxu0 0.0
    %769 = vmatprep.subr.mxu0 0.0
    %770 = vmatpush1.msra.mxu0 0.0
    %771 = vmatprep.subr.mxu0 0.0
    %772 = vmatpush1.msra.mxu0 0.0
    %773 = vmatprep.subr.mxu0 0.0
    %774 = vmatpush1.msra.mxu0 0.0
    %775 = vmatprep.subr.mxu0 0.0
    %776 = vmatpush1.msra.mxu0 0.0
    %777 = vmatprep.subr.mxu0 0.0
    %778 = vmatpush1.msra.mxu0 0.0
    %779 = vmatprep.subr.mxu0 0.0
    %780 = vmatpush1.msra.mxu0 %v712
    %781 = vmatprep.subr.mxu0 0.0
    %782 = vmatpush1.msra.mxu0 %v707
    %783 = vmatprep.subr.mxu0 0.0
    %784 = vmatpush1.msra.mxu0 %v702
    %785 = vmatprep.subr.mxu0 0.0
    %786 = vmatpush1.msra.mxu0 %v697
    %787 = vmatprep.subr.mxu0 0.0
    %788 = vmatpush2.msra.mxu0 0.0
    %789 = vmatprep.subr.mxu0 0.0
    %790 = vmatpush2.msra.mxu0 0.0
    %791 = vmatprep.subr.mxu0 0.0
    %792 = vmatpush2.msra.mxu0 0.0
    %793 = vmatprep.subr.mxu0 0.0
    %794 = vmatpush2.msra.mxu0 0.0
    %795 = vmatprep.subr.mxu0 0.0
    %796 = vmatpush2.msra.mxu0 0.0
    %797 = vmatprep.subr.mxu0 0.0
    %798 = vmatpush2.msra.mxu0 0.0
    %799 = vmatprep.subr.mxu0 0.0
    %800 = vmatpush2.msra.mxu0 0.0
    %801 = vmatprep.subr.mxu0 0.0
    %802 = vmatpush2.msra.mxu0 0.0
    %803 = vmatprep.subr.mxu0 0.0
    %804 = vmatpush2.msra.mxu0 0.0
    %805 = vmatprep.subr.mxu0 0.0
    %806 = vmatpush2.msra.mxu0 0.0
    %807 = vmatprep.subr.mxu0 0.0
    %808 = vmatpush2.msra.mxu0 0.0
    %809 = vmatprep.subr.mxu0 0.0
    %810 = vmatpush2.msra.mxu0 0.0
    %811 = vmatprep.subr.mxu0 0.0
    %812 = vmatpush2.msra.mxu0 0.0
    %813 = vmatprep.subr.mxu0 0.0
    %814 = vmatpush2.msra.mxu0 0.0
    %815 = vmatprep.subr.mxu0 0.0
    %816 = vmatpush2.msra.mxu0 0.0
    %817 = vmatprep.subr.mxu0 0.0
    %818 = vmatpush2.msra.mxu0 0.0
    %819 = vmatprep.mubr.f32.mxu0 0.0
    %820 = vmatmul.mubr.f32.gmra.mxu0 %v744
    %v821 = vpop.f32.mrf.mxu0
    %v822 = vadd.f32 %v726, %v821
    %v823 = vpop.f32.mrf.mxu0
    %824 = vmatprep.mubr.f32.mxu0 0.0
    %825 = vmatmul.mubr.f32.gmra.mxu0 %v747
    %v826 = vpop.f32.mrf.mxu0
    %v827 = vadd.f32 %v731, %v826
    %v828 = vpop.f32.mrf.mxu0
    %829 = vmatprep.mubr.f32.mxu0 0.0
    %830 = vmatmul.mubr.f32.gmra.mxu0 %v750
    %v831 = vpop.f32.mrf.mxu0
    %v832 = vadd.f32 %v736, %v831
    %v833 = vpop.f32.mrf.mxu0
    %834 = vmatprep.mubr.f32.mxu0 0.0
    %835 = vmatmul.mubr.f32.gmra.mxu0 %v753
    %v836 = vpop.f32.mrf.mxu0
    %v837 = vadd.f32 %v741, %v836
    %v838 = vpop.f32.mrf.mxu0
    %839 = vdwg.mxu0
    %v840 = vld [vmem:[%s10] sm:$0xff]
    %v841 = vld [vmem:[%s10 + $0x8] sm:$0xff]
    %v842 = vld [vmem:[%s10 + $0x10] sm:$0xff]
    %v843 = vld [vmem:[%s10 + $0x18] sm:$0xff]
    %v845 = vsel %vm411, %v840, 0
    %v848 = vsel %vm411, %v841, 0
    %v851 = vsel %vm411, %v842, 0
    %v854 = vsel %vm411, %v843, 0
    %856 = vmatprep.subr.mxu0 0.0
    %857 = vmatpush1.msra.mxu0 0.0
    %858 = vmatprep.subr.mxu0 0.0
    %859 = vmatpush1.msra.mxu0 0.0
    %860 = vmatprep.subr.mxu0 0.0
    %861 = vmatpush1.msra.mxu0 0.0
    %862 = vmatprep.subr.mxu0 0.0
    %863 = vmatpush1.msra.mxu0 0.0
    %864 = vmatprep.subr.mxu0 0.0
    %865 = vmatpush1.msra.mxu0 0.0
    %866 = vmatprep.subr.mxu0 0.0
    %867 = vmatpush1.msra.mxu0 0.0
    %868 = vmatprep.subr.mxu0 0.0
    %869 = vmatpush1.msra.mxu0 0.0
    %870 = vmatprep.subr.mxu0 0.0
    %871 = vmatpush1.msra.mxu0 0.0
    %872 = vmatprep.subr.mxu0 0.0
    %873 = vmatpush1.msra.mxu0 0.0
    %874 = vmatprep.subr.mxu0 0.0
    %875 = vmatpush1.msra.mxu0 0.0
    %876 = vmatprep.subr.mxu0 0.0
    %877 = vmatpush1.msra.mxu0 0.0
    %878 = vmatprep.subr.mxu0 0.0
    %879 = vmatpush1.msra.mxu0 0.0
    %880 = vmatprep.subr.mxu0 0.0
    %881 = vmatpush1.msra.mxu0 %v617
    %882 = vmatprep.subr.mxu0 0.0
    %883 = vmatpush1.msra.mxu0 %v616
    %884 = vmatprep.subr.mxu0 0.0
    %885 = vmatpush1.msra.mxu0 %v615
    %886 = vmatprep.subr.mxu0 0.0
    %887 = vmatpush1.msra.mxu0 %v614
    %888 = vmatprep.subr.mxu0 0.0
    %889 = vmatpush2.msra.mxu0 0.0
    %890 = vmatprep.subr.mxu0 0.0
    %891 = vmatpush2.msra.mxu0 0.0
    %892 = vmatprep.subr.mxu0 0.0
    %893 = vmatpush2.msra.mxu0 0.0
    %894 = vmatprep.subr.mxu0 0.0
    %895 = vmatpush2.msra.mxu0 0.0
    %896 = vmatprep.subr.mxu0 0.0
    %897 = vmatpush2.msra.mxu0 0.0
    %898 = vmatprep.subr.mxu0 0.0
    %899 = vmatpush2.msra.mxu0 0.0
    %900 = vmatprep.subr.mxu0 0.0
    %901 = vmatpush2.msra.mxu0 0.0
    %902 = vmatprep.subr.mxu0 0.0
    %903 = vmatpush2.msra.mxu0 0.0
    %904 = vmatprep.subr.mxu0 0.0
    %905 = vmatpush2.msra.mxu0 0.0
    %906 = vmatprep.subr.mxu0 0.0
    %907 = vmatpush2.msra.mxu0 0.0
    %908 = vmatprep.subr.mxu0 0.0
    %909 = vmatpush2.msra.mxu0 0.0
    %910 = vmatprep.subr.mxu0 0.0
    %911 = vmatpush2.msra.mxu0 0.0
    %912 = vmatprep.subr.mxu0 0.0
    %913 = vmatpush2.msra.mxu0 0.0
    %914 = vmatprep.subr.mxu0 0.0
    %915 = vmatpush2.msra.mxu0 0.0
    %916 = vmatprep.subr.mxu0 0.0
    %917 = vmatpush2.msra.mxu0 0.0
    %918 = vmatprep.subr.mxu0 0.0
    %919 = vmatpush2.msra.mxu0 0.0
    %920 = vmatprep.mubr.f32.mxu0 0.0
    %921 = vmatmul.mubr.f32.gmra.mxu0 %v845
    %v922 = vpop.f32.mrf.mxu0
    %v923 = vadd.f32 0.0, %v922
    %v924 = vpop.f32.mrf.mxu0
    %925 = vmatprep.mubr.f32.mxu0 0.0
    %926 = vmatmul.mubr.f32.gmra.mxu0 %v848
    %v927 = vpop.f32.mrf.mxu0
    %v928 = vadd.f32 0.0, %v927
    %v929 = vpop.f32.mrf.mxu0
    %930 = vmatprep.mubr.f32.mxu0 0.0
    %931 = vmatmul.mubr.f32.gmra.mxu0 %v851
    %v932 = vpop.f32.mrf.mxu0
    %v933 = vadd.f32 0.0, %v932
    %v934 = vpop.f32.mrf.mxu0
    %935 = vmatprep.mubr.f32.mxu0 0.0
    %936 = vmatmul.mubr.f32.gmra.mxu0 %v854
    %v937 = vpop.f32.mrf.mxu0
    %v938 = vadd.f32 0.0, %v937
    %v939 = vpop.f32.mrf.mxu0
    %940 = vdwg.mxu0
    %v941 = vadd.f32 %v822, %v923
    %v942 = vadd.f32 %v827, %v928
    %v943 = vadd.f32 %v832, %v933
    %v944 = vadd.f32 %v837, %v938
    %v946 = vsel %vm55, %v941, 0
    %v949 = vsel %vm55, %v942, 0
    %v952 = vsel %vm55, %v943, 0
    %v955 = vsel %vm55, %v944, 0
    %957 = vmatprep.subr.mxu0 0.0
    %958 = vmatpush1.msra.mxu0 0.0
    %959 = vmatprep.subr.mxu0 0.0
    %960 = vmatpush1.msra.mxu0 0.0
    %961 = vmatprep.subr.mxu0 0.0
    %962 = vmatpush1.msra.mxu0 0.0
    %963 = vmatprep.subr.mxu0 0.0
    %964 = vmatpush1.msra.mxu0 0.0
    %965 = vmatprep.subr.mxu0 0.0
    %966 = vmatpush1.msra.mxu0 0.0
    %967 = vmatprep.subr.mxu0 0.0
    %968 = vmatpush1.msra.mxu0 0.0
    %969 = vmatprep.subr.mxu0 0.0
    %970 = vmatpush1.msra.mxu0 0.0
    %971 = vmatprep.subr.mxu0 0.0
    %972 = vmatpush1.msra.mxu0 0.0
    %973 = vmatprep.subr.mxu0 0.0
    %974 = vmatpush1.msra.mxu0 0.0
    %975 = vmatprep.subr.mxu0 0.0
    %976 = vmatpush1.msra.mxu0 0.0
    %977 = vmatprep.subr.mxu0 0.0
    %978 = vmatpush1.msra.mxu0 0.0
    %979 = vmatprep.subr.mxu0 0.0
    %980 = vmatpush1.msra.mxu0 0.0
    %981 = vmatprep.subr.mxu0 0.0
    %982 = vmatpush1.msra.mxu0 0.0
    %983 = vmatprep.subr.mxu0 0.0
    %984 = vmatpush1.msra.mxu0 0.0
    %985 = vmatprep.subr.mxu0 0.0
    %986 = vmatpush1.msra.mxu0 %v161
    %987 = vmatprep.subr.mxu0 0.0
    %988 = vmatpush1.msra.mxu0 %v160
    %989 = vmatprep.subr.mxu0 0.0
    %990 = vmatpush2.msra.mxu0 0.0
    %991 = vmatprep.subr.mxu0 0.0
    %992 = vmatpush2.msra.mxu0 0.0
    %993 = vmatprep.subr.mxu0 0.0
    %994 = vmatpush2.msra.mxu0 0.0
    %995 = vmatprep.subr.mxu0 0.0
    %996 = vmatpush2.msra.mxu0 0.0
    %997 = vmatprep.subr.mxu0 0.0
    %998 = vmatpush2.msra.mxu0 0.0
    %999 = vmatprep.subr.mxu0 0.0
    %1000 = vmatpush2.msra.mxu0 0.0
    %1001 = vmatprep.subr.mxu0 0.0
    %1002 = vmatpush2.msra.mxu0 0.0
    %1003 = vmatprep.subr.mxu0 0.0
    %1004 = vmatpush2.msra.mxu0 0.0
    %1005 = vmatprep.subr.mxu0 0.0
    %1006 = vmatpush2.msra.mxu0 0.0
    %1007 = vmatprep.subr.mxu0 0.0
    %1008 = vmatpush2.msra.mxu0 0.0
    %1009 = vmatprep.subr.mxu0 0.0
    %1010 = vmatpush2.msra.mxu0 0.0
    %1011 = vmatprep.subr.mxu0 0.0
    %1012 = vmatpush2.msra.mxu0 0.0
    %1013 = vmatprep.subr.mxu0 0.0
    %1014 = vmatpush2.msra.mxu0 0.0
    %1015 = vmatprep.subr.mxu0 0.0
    %1016 = vmatpush2.msra.mxu0 0.0
    %1017 = vmatprep.subr.mxu0 0.0
    %1018 = vmatpush2.msra.mxu0 0.0
    %1019 = vmatprep.subr.mxu0 0.0
    %1020 = vmatpush2.msra.mxu0 0.0
    %1021 = vmatprep.mubr.f32.mxu0 0.0
    %1022 = vmatmul.mubr.f32.gmra.mxu0 %v946
    %v1023 = vpop.f32.mrf.mxu0
    %v1024 = vadd.f32 0.0, %v1023
    %v1025 = vpop.f32.mrf.mxu0
    %1026 = vmatprep.mubr.f32.mxu0 0.0
    %1027 = vmatmul.mubr.f32.gmra.mxu0 %v949
    %v1028 = vpop.f32.mrf.mxu0
    %v1029 = vadd.f32 0.0, %v1028
    %v1030 = vpop.f32.mrf.mxu0
    %1031 = vmatprep.mubr.f32.mxu0 0.0
    %1032 = vmatmul.mubr.f32.gmra.mxu0 %v952
    %v1033 = vpop.f32.mrf.mxu0
    %v1034 = vadd.f32 0.0, %v1033
    %v1035 = vpop.f32.mrf.mxu0
    %1036 = vmatprep.mubr.f32.mxu0 0.0
    %1037 = vmatmul.mubr.f32.gmra.mxu0 %v955
    %v1038 = vpop.f32.mrf.mxu0
    %v1039 = vadd.f32 0.0, %v1038
    %v1040 = vpop.f32.mrf.mxu0
    %1041 = vdwg.mxu0
    %1042 = vmatprep.subr.mxu0 0.0
    %1043 = vmatpush1.msra.mxu0 0.0
    %1044 = vmatprep.subr.mxu0 0.0
    %1045 = vmatpush1.msra.mxu0 0.0
    %1046 = vmatprep.subr.mxu0 0.0
    %1047 = vmatpush1.msra.mxu0 0.0
    %1048 = vmatprep.subr.mxu0 0.0
    %1049 = vmatpush1.msra.mxu0 0.0
    %1050 = vmatprep.subr.mxu0 0.0
    %1051 = vmatpush1.msra.mxu0 0.0
    %1052 = vmatprep.subr.mxu0 0.0
    %1053 = vmatpush1.msra.mxu0 0.0
    %1054 = vmatprep.subr.mxu0 0.0
    %1055 = vmatpush1.msra.mxu0 0.0
    %1056 = vmatprep.subr.mxu0 0.0
    %1057 = vmatpush1.msra.mxu0 0.0
    %1058 = vmatprep.subr.mxu0 0.0
    %1059 = vmatpush1.msra.mxu0 0.0
    %1060 = vmatprep.subr.mxu0 0.0
    %1061 = vmatpush1.msra.mxu0 0.0
    %1062 = vmatprep.subr.mxu0 0.0
    %1063 = vmatpush1.msra.mxu0 0.0
    %1064 = vmatprep.subr.mxu0 0.0
    %1065 = vmatpush1.msra.mxu0 0.0
    %1066 = vmatprep.subr.mxu0 0.0
    %1067 = vmatpush1.msra.mxu0 0.0
    %1068 = vmatprep.subr.mxu0 0.0
    %1069 = vmatpush1.msra.mxu0 0.0
    %1070 = vmatprep.subr.mxu0 0.0
    %1071 = vmatpush1.msra.mxu0 %v170
    %1072 = vmatprep.subr.mxu0 0.0
    %1073 = vmatpush1.msra.mxu0 %v169
    %1074 = vmatprep.subr.mxu0 0.0
    %1075 = vmatpush2.msra.mxu0 0.0
    %1076 = vmatprep.subr.mxu0 0.0
    %1077 = vmatpush2.msra.mxu0 0.0
    %1078 = vmatprep.subr.mxu0 0.0
    %1079 = vmatpush2.msra.mxu0 0.0
    %1080 = vmatprep.subr.mxu0 0.0
    %1081 = vmatpush2.msra.mxu0 0.0
    %1082 = vmatprep.subr.mxu0 0.0
    %1083 = vmatpush2.msra.mxu0 0.0
    %1084 = vmatprep.subr.mxu0 0.0
    %1085 = vmatpush2.msra.mxu0 0.0
    %1086 = vmatprep.subr.mxu0 0.0
    %1087 = vmatpush2.msra.mxu0 0.0
    %1088 = vmatprep.subr.mxu0 0.0
    %1089 = vmatpush2.msra.mxu0 0.0
    %1090 = vmatprep.subr.mxu0 0.0
    %1091 = vmatpush2.msra.mxu0 0.0
    %1092 = vmatprep.subr.mxu0 0.0
    %1093 = vmatpush2.msra.mxu0 0.0
    %1094 = vmatprep.subr.mxu0 0.0
    %1095 = vmatpush2.msra.mxu0 0.0
    %1096 = vmatprep.subr.mxu0 0.0
    %1097 = vmatpush2.msra.mxu0 0.0
    %1098 = vmatprep.subr.mxu0 0.0
    %1099 = vmatpush2.msra.mxu0 0.0
    %1100 = vmatprep.subr.mxu0 0.0
    %1101 = vmatpush2.msra.mxu0 0.0
    %1102 = vmatprep.subr.mxu0 0.0
    %1103 = vmatpush2.msra.mxu0 0.0
    %1104 = vmatprep.subr.mxu0 0.0
    %1105 = vmatpush2.msra.mxu0 0.0
    %1106 = vmatprep.mubr.f32.mxu0 0.0
    %1107 = vmatmul.mubr.f32.gmra.mxu0 %v946
    %v1108 = vpop.f32.mrf.mxu0
    %v1109 = vadd.f32 0.0, %v1108
    %v1110 = vpop.f32.mrf.mxu0
    %1111 = vmatprep.mubr.f32.mxu0 0.0
    %1112 = vmatmul.mubr.f32.gmra.mxu0 %v949
    %v1113 = vpop.f32.mrf.mxu0
    %v1114 = vadd.f32 0.0, %v1113
    %v1115 = vpop.f32.mrf.mxu0
    %1116 = vmatprep.mubr.f32.mxu0 0.0
    %1117 = vmatmul.mubr.f32.gmra.mxu0 %v952
    %v1118 = vpop.f32.mrf.mxu0
    %v1119 = vadd.f32 0.0, %v1118
    %v1120 = vpop.f32.mrf.mxu0
    %1121 = vmatprep.mubr.f32.mxu0 0.0
    %1122 = vmatmul.mubr.f32.gmra.mxu0 %v955
    %v1123 = vpop.f32.mrf.mxu0
    %v1124 = vadd.f32 0.0, %v1123
    %v1125 = vpop.f32.mrf.mxu0
    %1126 = vdwg.mxu0
    %v1127 = vmul.f32 %v1024, %v1109
    %v1128 = vmul.f32 %v1029, %v1114
    %v1129 = vmul.f32 %v1034, %v1119
    %v1130 = vmul.f32 %v1039, %v1124
    %v1131 = vsel %vm191, %v1127, 0.0
    %v1132 = vsel %vm191, %v1128, 0.0
    %v1133 = vadd.f32 %v1131, %v1132
    %v1134 = vsel %vm191, %v1129, 0.0
    %v1135 = vadd.f32 %v1133, %v1134
    %v1136 = vsel %vm191, %v1130, 0.0
    %v1137 = vadd.f32 %v1135, %v1136
    %v1138 = vrot.slane %v1137, 4
    %v1139 = vadd.f32 %v1137, %v1138
    %v1140 = vrot.slane %v1139, 2
    %v1141 = vadd.f32 %v1139, %v1140
    %v1142 = vrot.slane %v1141, 1
    %v1143 = vadd.f32 %v1141, %v1142
    %vm1144 = vcmask 188416
    %1145 = vst.msk [vmem:[#allocation2] sm:$0x1] %vm1144, %v1143
    // Predicated region
    $region46: #{model_forward.1} parent=1 // pred_check
      _
    $region47: #{model_forward.1} parent=1 // pred_check_branch
      %1147 = sbr.rel (0) target = $region49
    $region48: #{model_forward.1} parent=1 // pred_region
      %s1149 = ssub.s32 16, 16
      %1150 = vsyncadd [#allocation3], %s1149
      %s1152 = sshll.u32 [#allocation2], 4
      %s1153 = int_to_ptr.vmem [resolvable:$true] %s1152
      %1155 = dma.vmem_to_hbm [thread:$0]  %s1153, 16, %s11, [#allocation3]
    $region49: #{model_forward.1} parent=1 // pred_fallthru
      _
    // Predicated region
    $region50: #{model_forward.1} parent=1 // pred_check
      _
    $region51: #{model_forward.1} parent=1 // pred_check_branch
      %1157 = sbr.rel (0) target = $region53
    $region52: #{model_forward.1} parent=1 // pred_region
      %1158 = dma.done [#allocation3], 16
    $region53: #{model_forward.1} parent=1 // pred_fallthru
      _
    %1159 = vsyncpa [#allocation3], 1

</llo_original>
